<compile_context>
chip_gen: v7x
topology: tpu7x:2x2x1
jax: 0.10.0
libtpu: 0.0.40
codegen_flags: <defaults>
</compile_context>

<pallas_src>
import numpy as np

import jax
import jax.numpy as jnp
from jax.experimental import pallas as pl
from jax.experimental.pallas import tpu as pltpu


# Problem dimensions (fixed by the module).
IH, IW, IC = 11, 13, 7                      # input spatial / channels
K1, OC1 = 4, 24                             # conv kernel / out channels
OH1, OW1 = IH - K1 + 1, IW - K1 + 1         # 8, 10
K2, OC2 = 3, 16                             # conv-transpose kernel / out chan
OH2, OW2 = OH1 + K2 - 1, OW1 + K2 - 1       # 10, 12

N1 = OW1 * OC1                              # 240  (v1 lanes: (W, C) flattened)
N2 = OW2 * OC2                              # 192  (v2 lanes)
KDIM = K1 * IW * IC                         # 364  (conv im2col contraction)


# --------------------------------- kernel -----------------------------------

def fused_conv_kernel(lhs_ref, r_ref, b1_ref, t_ref, b2_ref, o_ref):
    # ---- Conv2d(7, 24, 4): single (8,364)x(364,240) bf16 GEMM, f32 acc ----
    v1 = jnp.dot(lhs_ref[...], r_ref[...],
                 preferred_element_type=jnp.float32) + b1_ref[...]
    v1b = v1.astype(jnp.bfloat16)           # stays in vregs; never touches HBM

    # ---- ConvTranspose2d(24, 16, 3): three 8-row GEMMs; kernel row ki
    #      shifts the partial down by ki rows inside the 10-row output ----
    p0 = jnp.dot(v1b, t_ref[0], preferred_element_type=jnp.float32)  # rows 0..7
    p1 = jnp.dot(v1b, t_ref[1], preferred_element_type=jnp.float32)  # rows 1..8
    p2 = jnp.dot(v1b, t_ref[2], preferred_element_type=jnp.float32)  # rows 2..9
    z1 = jnp.zeros((1, N2), jnp.float32)
    z2 = jnp.zeros((2, N2), jnp.float32)
    v2 = (b2_ref[...]
          + jnp.concatenate([p0, z2], axis=0)
          + jnp.concatenate([z1, p1, z1], axis=0)
          + jnp.concatenate([z2, p2], axis=0))

    # Fused hardswish epilogue: v2 * clamp(v2 + 3, 0, 6) / 6 (see TODO above).
    v5 = jnp.minimum(jnp.maximum(v2 + 3.0, 0.0), 6.0)
    o_ref[...] = v2 * v5 * (1.0 / 6.0)


# ------------------------ parameter preprocessing ---------------------------

def prepare_gemm_params(conv_w, conv_b, convt_w, convt_b):
    """Build GEMM-ready block-Toeplitz matrices ONCE, outside the jitted fwd."""
    conv_w = np.asarray(conv_w, np.float32)       # (24, 7, 4, 4)   OIHW
    convt_w = np.asarray(convt_w, np.float32)     # (24, 16, 3, 3)  IOHW

    # R[ki, w*IC + c, ow*OC1 + oc] = conv_w[oc, c, ki, kj],  w = ow + kj.
    R = np.zeros((K1, IW * IC, N1), np.float32)
    for ki in range(K1):
        for ow in range(OW1):
            for kj in range(K1):
                w = ow + kj
                R[ki, w * IC:(w + 1) * IC, ow * OC1:(ow + 1) * OC1] = \
                    conv_w[:, :, ki, kj].T
    R_big = R.reshape(KDIM, N1)                   # rows match im2col LHS cols
    b1 = np.tile(np.asarray(conv_b, np.float32), OW1).reshape(1, N1)

    # T[ki, w*OC1 + c, ow2*OC2 + o] = convt_w[c, o, ki, kj],  ow2 = w + kj.
    # The 8-row partial for kernel row ki lands at output rows ki..ki+7.
    T = np.zeros((K2, N1, N2), np.float32)
    for ki in range(K2):
        for w in range(OW1):
            for kj in range(K2):
                ow2 = w + kj
                T[ki, w * OC1:(w + 1) * OC1, ow2 * OC2:(ow2 + 1) * OC2] = \
                    convt_w[:, :, ki, kj]
    b2 = np.tile(np.asarray(convt_b, np.float32), OW2).reshape(1, N2)

    return (jnp.asarray(R_big, jnp.bfloat16), jnp.asarray(b1),
            jnp.asarray(T, jnp.bfloat16), jnp.asarray(b2))


# ------------------------------ forward pass --------------------------------

@jax.jit
def model_forward(x1, R, b1, T, b2):
    # NCHW -> (H, W*C), then row-im2col to a single (8, 364) bf16 GEMM LHS.
    x2d = x1[0].transpose(1, 2, 0).reshape(IH, IW * IC)            # (11, 91)
    lhs = jnp.concatenate([x2d[i:i + OH1] for i in range(K1)],
                          axis=1).astype(jnp.bfloat16)             # (8, 364)
    out2d = pl.pallas_call(
        fused_conv_kernel,
        out_shape=jax.ShapeDtypeStruct((OH2, N2), jnp.float32),
        in_specs=[pl.BlockSpec(memory_space=pltpu.MemorySpace.VMEM)] * 5,
        out_specs=pl.BlockSpec(memory_space=pltpu.MemorySpace.VMEM),
    )(lhs, R, b1, T, b2)
    # (10, 12*16) -> (1, 16, 10, 12); tiny transpose fused into the same jit.
    return out2d.reshape(OH2, OW2, OC2).transpose(2, 0, 1)[None]


# ------------------------------- reference ----------------------------------

def numpy_reference(x1, conv_w, conv_b, convt_w, convt_b):
    """Direct-definition conv / conv_transpose + hardswish(v2) reference."""
    x = np.asarray(x1, np.float32)[0]             # (7, 11, 13)
    W1 = np.asarray(conv_w, np.float32)           # (24, 7, 4, 4)
    Wt = np.asarray(convt_w, np.float32)          # (24, 16, 3, 3)
    v1 = np.zeros((OC1, OH1, OW1), np.float32)
    for i in range(K1):
        for j in range(K1):
            v1 += np.einsum('chw,oc->ohw', x[:, i:i + OH1, j:j + OW1],
                            W1[:, :, i, j])
    v1 += np.asarray(conv_b, np.float32)[:, None, None]
    v2 = np.zeros((OC2, OH2, OW2), np.float32)
    for i in range(K2):
        for j in range(K2):
            v2[:, i:i + OH1, j:j + OW1] += np.einsum('chw,co->ohw', v1,
                                                     Wt[:, :, i, j])
    v2 += np.asarray(convt_b, np.float32)[:, None, None]
    v5 = np.clip(v2 + 3.0, 0.0, 6.0)
    return (v2 * v5 / 6.0)[None]


# -------------------------------- driver ------------------------------------

if __name__ == "__main__":
    key = jax.random.PRNGKey(0)
    k_x, k_w1, k_b1, k_w2, k_b2 = jax.random.split(key, 5)

    # Input matches the module's x1 = torch.randn(1, 7, 11, 13)
    x1 = jax.random.normal(k_x, (1, IC, IH, IW), dtype=jnp.float32)

    # Conv2d(7, 24, 4) params (PyTorch-style uniform init).
    bound1 = 1.0 / ((IC * K1 * K1) ** 0.5)
    conv_w = jax.random.uniform(k_w1, (OC1, IC, K1, K1), jnp.float32,
                                -bound1, bound1)
    conv_b = jax.random.uniform(k_b1, (OC1,), jnp.float32, -bound1, bound1)

    # ConvTranspose2d(24, 16, 3) params (weight layout (in, out, kh, kw)).
    bound2 = 1.0 / ((OC2 * K2 * K2) ** 0.5)
    convt_w = jax.random.uniform(k_w2, (OC1, OC2, K2, K2), jnp.float32,
                                 -bound2, bound2)
    convt_b = jax.random.uniform(k_b2, (OC2,), jnp.float32, -bound2, bound2)

    # One-time weight rearrangement (outside jit / per-call graph).
    R, b1r, T, b2r = prepare_gemm_params(conv_w, conv_b, convt_w, convt_b)

    out = model_forward(x1, R, b1r, T, b2r)
    out = jax.block_until_ready(out)
    assert out.shape == (1, OC2, OH2, OW2), out.shape

    # bf16 GEMM operands (f32 accumulation) -> slightly relaxed tolerance vs
    # the f32 numpy reference.
    ref = numpy_reference(x1, conv_w, conv_b, convt_w, convt_b)
    np.testing.assert_allclose(np.asarray(out), ref, rtol=2e-2, atol=2e-2)
    print("KERNEL_OK")
</pallas_src>

<mosaic_0001>
module attributes {stable_mosaic.version = 11 : i64} {
  func.func @fused_conv_kernel(%arg0: memref<8x364xbf16, #tpu.memory_space<vmem>>, %arg1: memref<364x240xbf16, #tpu.memory_space<vmem>>, %arg2: memref<1x240xf32, #tpu.memory_space<vmem>>, %arg3: memref<3x240x192xbf16, #tpu.memory_space<vmem>>, %arg4: memref<1x192xf32, #tpu.memory_space<vmem>>, %arg5: memref<10x192xf32, #tpu.memory_space<vmem>>) attributes {dimension_semantics = [], scalar_prefetch = 0 : i64, scratch_operands = 0 : i64, tpu.core_type = #tpu.core_type<tc>} {
    %c0 = arith.constant 0 : index
    %c0_0 = arith.constant 0 : index
    %0 = vector.load %arg0[%c0, %c0_0] : memref<8x364xbf16, #tpu.memory_space<vmem>>, vector<8x364xbf16>
    %c0_1 = arith.constant 0 : index
    %c0_2 = arith.constant 0 : index
    %1 = vector.load %arg1[%c0_1, %c0_2] : memref<364x240xbf16, #tpu.memory_space<vmem>>, vector<364x240xbf16>
    %cst = arith.constant dense<0.000000e+00> : vector<8x240xf32>
    %2 = tpu.matmul %0, %1, %cst {dimension_numbers = #tpu.dot_dimension_numbers<[1], [0], [0], [1], [0, 0, 1, 1], [], []>} : vector<8x364xbf16>, vector<364x240xbf16>, vector<8x240xf32> -> vector<8x240xf32>
    %c0_3 = arith.constant 0 : index
    %c0_4 = arith.constant 0 : index
    %3 = vector.load %arg2[%c0_3, %c0_4] : memref<1x240xf32, #tpu.memory_space<vmem>>, vector<1x240xf32>
    %4 = vector.broadcast %3 : vector<1x240xf32> to vector<8x240xf32>
    %5 = arith.addf %2, %4 : vector<8x240xf32>
    %6 = arith.truncf %5 : vector<8x240xf32> to vector<8x240xbf16>
    %c0_5 = arith.constant 0 : index
    %c0_6 = arith.constant 0 : index
    %c0_7 = arith.constant 0 : index
    %7 = vector.load %arg3[%c0_5, %c0_6, %c0_7] : memref<3x240x192xbf16, #tpu.memory_space<vmem>>, vector<1x240x192xbf16>
    %8 = vector.shape_cast %7 : vector<1x240x192xbf16> to vector<240x192xbf16>
    %cst_8 = arith.constant dense<0.000000e+00> : vector<8x192xf32>
    %9 = tpu.matmul %6, %8, %cst_8 {dimension_numbers = #tpu.dot_dimension_numbers<[1], [0], [0], [1], [0, 0, 1, 1], [], []>} : vector<8x240xbf16>, vector<240x192xbf16>, vector<8x192xf32> -> vector<8x192xf32>
    %c1 = arith.constant 1 : index
    %c0_9 = arith.constant 0 : index
    %c0_10 = arith.constant 0 : index
    %10 = vector.load %arg3[%c1, %c0_9, %c0_10] : memref<3x240x192xbf16, #tpu.memory_space<vmem>>, vector<1x240x192xbf16>
    %11 = vector.shape_cast %10 : vector<1x240x192xbf16> to vector<240x192xbf16>
    %cst_11 = arith.constant dense<0.000000e+00> : vector<8x192xf32>
    %12 = tpu.matmul %6, %11, %cst_11 {dimension_numbers = #tpu.dot_dimension_numbers<[1], [0], [0], [1], [0, 0, 1, 1], [], []>} : vector<8x240xbf16>, vector<240x192xbf16>, vector<8x192xf32> -> vector<8x192xf32>
    %c2 = arith.constant 2 : index
    %c0_12 = arith.constant 0 : index
    %c0_13 = arith.constant 0 : index
    %13 = vector.load %arg3[%c2, %c0_12, %c0_13] : memref<3x240x192xbf16, #tpu.memory_space<vmem>>, vector<1x240x192xbf16>
    %14 = vector.shape_cast %13 : vector<1x240x192xbf16> to vector<240x192xbf16>
    %cst_14 = arith.constant dense<0.000000e+00> : vector<8x192xf32>
    %15 = tpu.matmul %6, %14, %cst_14 {dimension_numbers = #tpu.dot_dimension_numbers<[1], [0], [0], [1], [0, 0, 1, 1], [], []>} : vector<8x240xbf16>, vector<240x192xbf16>, vector<8x192xf32> -> vector<8x192xf32>
    %cst_15 = arith.constant 0.000000e+00 : f32
    %16 = vector.broadcast %cst_15 : f32 to vector<1x192xf32>
    %cst_16 = arith.constant 0.000000e+00 : f32
    %17 = vector.broadcast %cst_16 : f32 to vector<2x192xf32>
    %c0_17 = arith.constant 0 : index
    %c0_18 = arith.constant 0 : index
    %18 = vector.load %arg4[%c0_17, %c0_18] : memref<1x192xf32, #tpu.memory_space<vmem>>, vector<1x192xf32>
    %19 = tpu.concatenate %9, %17 in 0 : vector<8x192xf32>, vector<2x192xf32> -> vector<10x192xf32>
    %20 = vector.broadcast %18 : vector<1x192xf32> to vector<10x192xf32>
    %21 = arith.addf %20, %19 : vector<10x192xf32>
    %22 = tpu.concatenate %16, %12, %16 in 0 : vector<1x192xf32>, vector<8x192xf32>, vector<1x192xf32> -> vector<10x192xf32>
    %23 = arith.addf %21, %22 : vector<10x192xf32>
    %24 = tpu.concatenate %17, %15 in 0 : vector<2x192xf32>, vector<8x192xf32> -> vector<10x192xf32>
    %25 = arith.addf %23, %24 : vector<10x192xf32>
    %cst_19 = arith.constant 3.000000e+00 : f32
    %26 = vector.broadcast %cst_19 : f32 to vector<10x192xf32>
    %27 = arith.addf %25, %26 : vector<10x192xf32>
    %cst_20 = arith.constant 0.000000e+00 : f32
    %28 = vector.broadcast %cst_20 : f32 to vector<10x192xf32>
    %29 = arith.maximumf %27, %28 : vector<10x192xf32>
    %cst_21 = arith.constant 6.000000e+00 : f32
    %30 = vector.broadcast %cst_21 : f32 to vector<10x192xf32>
    %31 = arith.minimumf %29, %30 : vector<10x192xf32>
    %32 = arith.mulf %25, %31 : vector<10x192xf32>
    %cst_22 = arith.constant 0.166666672 : f32
    %33 = vector.broadcast %cst_22 : f32 to vector<10x192xf32>
    %34 = arith.mulf %32, %33 : vector<10x192xf32>
    %c0_23 = arith.constant 0 : index
    %c0_24 = arith.constant 0 : index
    %35 = vector.load %arg5[%c0_23, %c0_24] : memref<10x192xf32, #tpu.memory_space<vmem>>, vector<10x192xf32>
    tpu.vector_store %arg5[%c0_23, %c0_24], %34 {strides = array<i32>} : memref<10x192xf32, #tpu.memory_space<vmem>>, vector<10x192xf32>,
    return
  }
}

</mosaic_0001>

<llo_original>
// kernel: model_forward.1
$region0: #{model_forward.1}
  #allocation0 [shape = 'u32[]', space=smem, size = 0x4, offset = 0x4, fixed_abs, tag = 'smem constant byte address 0x4 - core index']
  #allocation1 [shape = 'u32[144,128]{1,0:T(1,128)}', space=vmem, size = 0x12000, scoped, tag = 'internal scratch']
  %s0 = inlined_call_operand.vmem [shape: bf16[8,364], index: 0, kind: input, shape index: {}]
  %s1 = inlined_call_operand.vmem [shape: bf16[364,240], index: 1, kind: input, shape index: {}]
  %s2 = inlined_call_operand.vmem [shape: f32[1,240], index: 2, kind: input, shape index: {}]
  %s3 = inlined_call_operand.vmem [shape: bf16[3,240,192], index: 3, kind: input, shape index: {}]
  %s4 = inlined_call_operand.vmem [shape: f32[1,192], index: 4, kind: input, shape index: {}]
  %s5 = inlined_call_operand.vmem [shape: f32[10,192], index: 5, kind: output, shape index: {}]
  %s6 = sld [smem:[#allocation0]]
  $region30: #{model_forward.1} parent=0
    _
  %s8 = ssub.s32 1, %s6
  %s9 = scalar_select 0, %s8, %s6
  // Predicated region
  $region2: #{model_forward.1} parent=0 // pred_check
    _
  $region3: #{model_forward.1} parent=0 // pred_check_branch
    %11 = sbr.rel (0) target = $region5
  $region4: #{model_forward.1} parent=0 // pred_region
    _
  $region5: #{model_forward.1} parent=0 // pred_fallthru
    _
  // Predicated region
  $region6: #{model_forward.1} parent=0 // pred_check
    _
  $region7: #{model_forward.1} parent=0 // pred_check_branch
    %13 = sbr.rel (0) target = $region9
  $region8: #{model_forward.1} parent=0 // pred_region
    _
  $region9: #{model_forward.1} parent=0 // pred_fallthru
    _
  // Predicated region
  $region10: #{model_forward.1} parent=0 // pred_check
    _
  $region11: #{model_forward.1} parent=0 // pred_check_branch
    %15 = sbr.rel (0) target = $region13
  $region12: #{model_forward.1} parent=0 // pred_region
    _
  $region13: #{model_forward.1} parent=0 // pred_fallthru
    _
  // Predicated region
  $region14: #{model_forward.1} parent=0 // pred_check
    _
  $region15: #{model_forward.1} parent=0 // pred_check_branch
    %17 = sbr.rel (0) target = $region17
  $region16: #{model_forward.1} parent=0 // pred_region
    _
  $region17: #{model_forward.1} parent=0 // pred_fallthru
    _
  // Predicated region
  $region18: #{model_forward.1} parent=0 // pred_check
    _
  $region19: #{model_forward.1} parent=0 // pred_check_branch
    %19 = sbr.rel (0) target = $region21
  $region20: #{model_forward.1} parent=0 // pred_region
    _
  $region21: #{model_forward.1} parent=0 // pred_fallthru
    _
  %v21 = vld [vmem:[%s0] sm:$0xff]
  %v22 = vld [vmem:[%s0 + $0x8] sm:$0xf]
  %v23 = vld [vmem:[%s1] sm:$0xff]
  %v24 = vld [vmem:[%s1 + $0x8] sm:$0xff]
  %v25 = vld [vmem:[%s1 + $0x10] sm:$0xff]
  %v26 = vld [vmem:[%s1 + $0x18] sm:$0xff]
  %v27 = vld [vmem:[%s1 + $0x20] sm:$0xff]
  %v28 = vld [vmem:[%s1 + $0x28] sm:$0xff]
  %v29 = vld [vmem:[%s1 + $0x30] sm:$0xff]
  %v30 = vld [vmem:[%s1 + $0x38] sm:$0xff]
  %v31 = vld [vmem:[%s1 + $0x40] sm:$0xff]
  %v32 = vld [vmem:[%s1 + $0x48] sm:$0xff]
  %v33 = vld [vmem:[%s1 + $0x50] sm:$0xff]
  %v34 = vld [vmem:[%s1 + $0x58] sm:$0xff]
  %v35 = vld [vmem:[%s1 + $0x60] sm:$0xff]
  %v36 = vld [vmem:[%s1 + $0x68] sm:$0xff]
  %v37 = vld [vmem:[%s1 + $0x70] sm:$0xff]
  %v38 = vld [vmem:[%s1 + $0x78] sm:$0xff]
  %v39 = vld [vmem:[%s1 + $0x80] sm:$0xff]
  %v40 = vld [vmem:[%s1 + $0x88] sm:$0xff]
  %v41 = vld [vmem:[%s1 + $0x90] sm:$0xff]
  %v42 = vld [vmem:[%s1 + $0x98] sm:$0xff]
  %v43 = vld [vmem:[%s1 + $0xa0] sm:$0xff]
  %v44 = vld [vmem:[%s1 + $0xa8] sm:$0xff]
  %v45 = vld [vmem:[%s1 + $0xb0] sm:$0xff]
  %v46 = vld [vmem:[%s1 + $0xb8] sm:$0xff]
  %v47 = vld [vmem:[%s1 + $0xc0] sm:$0xff]
  %v48 = vld [vmem:[%s1 + $0xc8] sm:$0xff]
  %v49 = vld [vmem:[%s1 + $0xd0] sm:$0xff]
  %v50 = vld [vmem:[%s1 + $0xd8] sm:$0xff]
  %v51 = vld [vmem:[%s1 + $0xe0] sm:$0xff]
  %v52 = vld [vmem:[%s1 + $0xe8] sm:$0xff]
  %v53 = vld [vmem:[%s1 + $0xf0] sm:$0xff]
  %v54 = vld [vmem:[%s1 + $0xf8] sm:$0xff]
  %v55 = vld [vmem:[%s1 + $0x100] sm:$0xff]
  %v56 = vld [vmem:[%s1 + $0x108] sm:$0xff]
  %v57 = vld [vmem:[%s1 + $0x110] sm:$0xff]
  %v58 = vld [vmem:[%s1 + $0x118] sm:$0xff]
  %v59 = vld [vmem:[%s1 + $0x120] sm:$0xff]
  %v60 = vld [vmem:[%s1 + $0x128] sm:$0xff]
  %v61 = vld [vmem:[%s1 + $0x130] sm:$0xff]
  %v62 = vld [vmem:[%s1 + $0x138] sm:$0xff]
  %v63 = vld [vmem:[%s1 + $0x140] sm:$0xff]
  %v64 = vld [vmem:[%s1 + $0x148] sm:$0xff]
  %v65 = vld [vmem:[%s1 + $0x150] sm:$0xff]
  %v66 = vld [vmem:[%s1 + $0x158] sm:$0xff]
  %v67 = vld [vmem:[%s1 + $0x160] sm:$0xff]
  %v68 = vld [vmem:[%s1 + $0x168] sm:$0x33]
  %v69 = vld [vmem:[%s2] sm:$0x3]
  %v71 = vlaneseq
  %v72 = vshrl.u32 %v71, 7
  %v73 = vsub.s32 0, %v72
  %v74 = vrot.slane %v69, %v73
  %v75 = vlaneseq
  %v76 = vshrl.u32 %v75, 7
  %v77 = vsub.s32 1, %v76
  %v78 = vrot.slane %v69, %v77
  %v83 = vunpack.c.l.b16 %v21
  %v84 = vunpack.c.h.b16 %v21
  %v85 = vunpack.c.l.b16 %v22
  %v86 = vpack.c.b16 %v83, %v83
  %v87 = vpack.c.b16 %v84, %v84
  %v88 = vpack.c.b16 %v85, %v85
  %v137 = vunpack.c.l.b16 %v23
  %v138 = vunpack.c.h.b16 %v23
  %v139 = vunpack.c.l.b16 %v24
  %v140 = vunpack.c.h.b16 %v24
  %v141 = vunpack.c.l.b16 %v25
  %v142 = vunpack.c.h.b16 %v25
  %v143 = vunpack.c.l.b16 %v26
  %v144 = vunpack.c.h.b16 %v26
  %v145 = vunpack.c.l.b16 %v27
  %v146 = vunpack.c.h.b16 %v27
  %v147 = vunpack.c.l.b16 %v28
  %v148 = vunpack.c.h.b16 %v28
  %v149 = vunpack.c.l.b16 %v29
  %v150 = vunpack.c.h.b16 %v29
  %v151 = vunpack.c.l.b16 %v30
  %v152 = vunpack.c.h.b16 %v30
  %v153 = vunpack.c.l.b16 %v31
  %v154 = vunpack.c.h.b16 %v31
  %v155 = vunpack.c.l.b16 %v32
  %v156 = vunpack.c.h.b16 %v32
  %v157 = vunpack.c.l.b16 %v33
  %v158 = vunpack.c.h.b16 %v33
  %v159 = vunpack.c.l.b16 %v34
  %v160 = vunpack.c.h.b16 %v34
  %v161 = vunpack.c.l.b16 %v35
  %v162 = vunpack.c.h.b16 %v35
  %v163 = vunpack.c.l.b16 %v36
  %v164 = vunpack.c.h.b16 %v36
  %v165 = vunpack.c.l.b16 %v37
  %v166 = vunpack.c.h.b16 %v37
  %v167 = vunpack.c.l.b16 %v38
  %v168 = vunpack.c.h.b16 %v38
  %v169 = vunpack.c.l.b16 %v39
  %v170 = vunpack.c.h.b16 %v39
  %v171 = vunpack.c.l.b16 %v40
  %v172 = vunpack.c.h.b16 %v40
  %v173 = vunpack.c.l.b16 %v41
  %v174 = vunpack.c.h.b16 %v41
  %v175 = vunpack.c.l.b16 %v42
  %v176 = vunpack.c.h.b16 %v42
  %v177 = vunpack.c.l.b16 %v43
  %v178 = vunpack.c.h.b16 %v43
  %v179 = vunpack.c.l.b16 %v44
  %v180 = vunpack.c.h.b16 %v44
  %v181 = vunpack.c.l.b16 %v45
  %v182 = vunpack.c.h.b16 %v45
  %v183 = vunpack.c.l.b16 %v46
  %v184 = vunpack.c.h.b16 %v46
  %v185 = vunpack.c.l.b16 %v47
  %v186 = vunpack.c.h.b16 %v47
  %v187 = vunpack.c.l.b16 %v48
  %v188 = vunpack.c.h.b16 %v48
  %v189 = vunpack.c.l.b16 %v49
  %v190 = vunpack.c.h.b16 %v49
  %v191 = vunpack.c.l.b16 %v50
  %v192 = vunpack.c.h.b16 %v50
  %v193 = vunpack.c.l.b16 %v51
  %v194 = vunpack.c.h.b16 %v51
  %v195 = vunpack.c.l.b16 %v52
  %v196 = vunpack.c.h.b16 %v52
  %v197 = vunpack.c.l.b16 %v53
  %v198 = vunpack.c.h.b16 %v53
  %v199 = vunpack.c.l.b16 %v54
  %v200 = vunpack.c.h.b16 %v54
  %v201 = vunpack.c.l.b16 %v55
  %v202 = vunpack.c.h.b16 %v55
  %v203 = vunpack.c.l.b16 %v56
  %v204 = vunpack.c.h.b16 %v56
  %v205 = vunpack.c.l.b16 %v57
  %v206 = vunpack.c.h.b16 %v57
  %v207 = vunpack.c.l.b16 %v58
  %v208 = vunpack.c.h.b16 %v58
  %v209 = vunpack.c.l.b16 %v59
  %v210 = vunpack.c.h.b16 %v59
  %v211 = vunpack.c.l.b16 %v60
  %v212 = vunpack.c.h.b16 %v60
  %v213 = vunpack.c.l.b16 %v61
  %v214 = vunpack.c.h.b16 %v61
  %v215 = vunpack.c.l.b16 %v62
  %v216 = vunpack.c.h.b16 %v62
  %v217 = vunpack.c.l.b16 %v63
  %v218 = vunpack.c.h.b16 %v63
  %v219 = vunpack.c.l.b16 %v64
  %v220 = vunpack.c.h.b16 %v64
  %v221 = vunpack.c.l.b16 %v65
  %v222 = vunpack.c.h.b16 %v65
  %v223 = vunpack.c.l.b16 %v66
  %v224 = vunpack.c.h.b16 %v66
  %v225 = vunpack.c.l.b16 %v67
  %v226 = vunpack.c.h.b16 %v67
  %v227 = vunpack.c.l.b16 %v68
  %v228 = vunpack.c.h.b16 %v68
  %v229 = vpack.c.b16 %v139, %v137
  %v230 = vpack.c.b16 %v140, %v138
  %v231 = vpack.c.b16 %v143, %v141
  %v232 = vpack.c.b16 %v144, %v142
  %v233 = vpack.c.b16 %v147, %v145
  %v234 = vpack.c.b16 %v148, %v146
  %v235 = vpack.c.b16 %v151, %v149
  %v236 = vpack.c.b16 %v152, %v150
  %v237 = vpack.c.b16 %v155, %v153
  %v238 = vpack.c.b16 %v156, %v154
  %v239 = vpack.c.b16 %v159, %v157
  %v240 = vpack.c.b16 %v160, %v158
  %v241 = vpack.c.b16 %v163, %v161
  %v242 = vpack.c.b16 %v164, %v162
  %v243 = vpack.c.b16 %v167, %v165
  %v244 = vpack.c.b16 %v168, %v166
  %v245 = vpack.c.b16 %v171, %v169
  %v246 = vpack.c.b16 %v172, %v170
  %v247 = vpack.c.b16 %v175, %v173
  %v248 = vpack.c.b16 %v176, %v174
  %v249 = vpack.c.b16 %v179, %v177
  %v250 = vpack.c.b16 %v180, %v178
  %v251 = vpack.c.b16 %v183, %v181
  %v252 = vpack.c.b16 %v184, %v182
  %v253 = vpack.c.b16 %v187, %v185
  %v254 = vpack.c.b16 %v188, %v186
  %v255 = vpack.c.b16 %v191, %v189
  %v256 = vpack.c.b16 %v192, %v190
  %v257 = vpack.c.b16 %v195, %v193
  %v258 = vpack.c.b16 %v196, %v194
  %v259 = vpack.c.b16 %v199, %v197
  %v260 = vpack.c.b16 %v200, %v198
  %v261 = vpack.c.b16 %v203, %v201
  %v262 = vpack.c.b16 %v204, %v202
  %v263 = vpack.c.b16 %v207, %v205
  %v264 = vpack.c.b16 %v208, %v206
  %v265 = vpack.c.b16 %v211, %v209
  %v266 = vpack.c.b16 %v212, %v210
  %v267 = vpack.c.b16 %v215, %v213
  %v268 = vpack.c.b16 %v216, %v214
  %v269 = vpack.c.b16 %v219, %v217
  %v270 = vpack.c.b16 %v220, %v218
  %v271 = vpack.c.b16 %v223, %v221
  %v272 = vpack.c.b16 %v224, %v222
  %v273 = vpack.c.b16 %v227, %v225
  %v274 = vpack.c.b16 %v228, %v226
  %vm319 = vcmask 883712
  %v321 = vsel %vm319, %v88, 0
  %vm323 = vcmask 1045504
  %v325 = vsel %vm323, %v273, 0
  %v328 = vsel %vm323, %v274, 0
  %330 = vmatprep.subr.bf16.mxu0 %v230
  %331 = vmatpush1.bf16.msra.mxu0 %v229
  %332 = vmatprep.subr.bf16.mxu0 %v232
  %333 = vmatpush1.bf16.msra.mxu0 %v231
  %334 = vmatprep.subr.bf16.mxu0 %v234
  %335 = vmatpush1.bf16.msra.mxu0 %v233
  %336 = vmatprep.subr.bf16.mxu0 %v236
  %337 = vmatpush1.bf16.msra.mxu0 %v235
  %338 = vmatprep.subr.bf16.mxu0 %v238
  %339 = vmatpush1.bf16.msra.mxu0 %v237
  %340 = vmatprep.subr.bf16.mxu0 %v240
  %341 = vmatpush1.bf16.msra.mxu0 %v239
  %342 = vmatprep.subr.bf16.mxu0 %v242
  %343 = vmatpush1.bf16.msra.mxu0 %v241
  %344 = vmatprep.subr.bf16.mxu0 %v244
  %345 = vmatpush1.bf16.msra.mxu0 %v243
  %346 = vmatprep.subr.bf16.mxu0 %v246
  %347 = vmatpush1.bf16.msra.mxu0 %v245
  %348 = vmatprep.subr.bf16.mxu0 %v248
  %349 = vmatpush1.bf16.msra.mxu0 %v247
  %350 = vmatprep.subr.bf16.mxu0 %v250
  %351 = vmatpush1.bf16.msra.mxu0 %v249
  %352 = vmatprep.subr.bf16.mxu0 %v252
  %353 = vmatpush1.bf16.msra.mxu0 %v251
  %354 = vmatprep.subr.bf16.mxu0 %v254
  %355 = vmatpush1.bf16.msra.mxu0 %v253
  %356 = vmatprep.subr.bf16.mxu0 %v256
  %357 = vmatpush1.bf16.msra.mxu0 %v255
  %358 = vmatprep.subr.bf16.mxu0 %v258
  %359 = vmatpush1.bf16.msra.mxu0 %v257
  %360 = vmatprep.subr.bf16.mxu0 %v260
  %361 = vmatpush1.bf16.msra.mxu0 %v259
  %362 = vmatprep.mubr.bf16.mxu0 %v87
  %363 = vmatmul.mubr.bf16.gmra.mrb[0].mxu0 %v86
  %v364 = vpop.f32.mrb[0].mxu0
  %v365 = vadd.f32 %v74, %v364
  %v366 = vpop.f32.mrb[0].mxu0
  %v367 = vadd.f32 %v78, %v366
  %v368 = vpop.f32.mrb[0].mxu0
  %v369 = vpop.f32.mrb[0].mxu0
  %370 = vdwg.mxu0
  %371 = vmatprep.subr.bf16.mxu0 %v262
  %372 = vmatpush1.bf16.msra.mxu0 %v261
  %373 = vmatprep.subr.bf16.mxu0 %v264
  %374 = vmatpush1.bf16.msra.mxu0 %v263
  %375 = vmatprep.subr.bf16.mxu0 %v266
  %376 = vmatpush1.bf16.msra.mxu0 %v265
  %377 = vmatprep.subr.bf16.mxu0 %v268
  %378 = vmatpush1.bf16.msra.mxu0 %v267
  %379 = vmatprep.subr.bf16.mxu0 %v270
  %380 = vmatpush1.bf16.msra.mxu0 %v269
  %381 = vmatprep.subr.bf16.mxu0 %v272
  %382 = vmatpush1.bf16.msra.mxu0 %v271
  %383 = vmatprep.subr.bf16.mxu0 %v328
  %384 = vmatpush1.bf16.msra.mxu0 %v325
  %385 = vmatprep.subr.bf16.mxu0 0
  %386 = vmatpush1.bf16.msra.mxu0 0
  %387 = vmatprep.subr.bf16.mxu0 0
  %388 = vmatpush1.bf16.msra.mxu0 0
  %389 = vmatprep.subr.bf16.mxu0 0
  %390 = vmatpush1.bf16.msra.mxu0 0
  %391 = vmatprep.subr.bf16.mxu0 0
  %392 = vmatpush1.bf16.msra.mxu0 0
  %393 = vmatprep.subr.bf16.mxu0 0
  %394 = vmatpush1.bf16.msra.mxu0 0
  %395 = vmatprep.subr.bf16.mxu0 0
  %396 = vmatpush1.bf16.msra.mxu0 0
  %397 = vmatprep.subr.bf16.mxu0 0
  %398 = vmatpush1.bf16.msra.mxu0 0
  %399 = vmatprep.subr.bf16.mxu0 0
  %400 = vmatpush1.bf16.msra.mxu0 0
  %401 = vmatprep.subr.bf16.mxu0 0
  %402 = vmatpush1.bf16.msra.mxu0 0
  %403 = vmatprep.mubr.bf16.mxu0 0
  %404 = vmatmul.mubr.bf16.gmra.mrb[0].mxu0 %v321
  %v405 = vpop.f32.mrb[0].mxu0
  %v406 = vadd.f32 %v365, %v405
  %v407 = vpop.f32.mrb[0].mxu0
  %v408 = vadd.f32 %v367, %v407
  %v409 = vpop.f32.mrb[0].mxu0
  %v410 = vpop.f32.mrb[0].mxu0
  %411 = vdwg.mxu0
  %v412 = vpack.c.bf16 %v406, %v406
  %v413 = vpack.c.bf16 %v408, %v408
  %v414 = vld [vmem:[%s3] sm:$0xff]
  %v415 = vld [vmem:[%s3 + $0x8] sm:$0xff]
  %v416 = vld [vmem:[%s3 + $0x10] sm:$0xff]
  %v417 = vld [vmem:[%s3 + $0x18] sm:$0xff]
  %v418 = vld [vmem:[%s3 + $0x20] sm:$0xff]
  %v419 = vld [vmem:[%s3 + $0x28] sm:$0xff]
  %v420 = vld [vmem:[%s3 + $0x30] sm:$0xff]
  %v421 = vld [vmem:[%s3 + $0x38] sm:$0xff]
  %v422 = vld [vmem:[%s3 + $0x40] sm:$0xff]
  %v423 = vld [vmem:[%s3 + $0x48] sm:$0xff]
  %v424 = vld [vmem:[%s3 + $0x50] sm:$0xff]
  %v425 = vld [vmem:[%s3 + $0x58] sm:$0xff]
  %v426 = vld [vmem:[%s3 + $0x60] sm:$0xff]
  %v427 = vld [vmem:[%s3 + $0x68] sm:$0xff]
  %v428 = vld [vmem:[%s3 + $0x70] sm:$0xff]
  %v429 = vld [vmem:[%s3 + $0x78] sm:$0xff]
  %v430 = vld [vmem:[%s3 + $0x80] sm:$0xff]
  %v431 = vld [vmem:[%s3 + $0x88] sm:$0xff]
  %v432 = vld [vmem:[%s3 + $0x90] sm:$0xff]
  %v433 = vld [vmem:[%s3 + $0x98] sm:$0xff]
  %v434 = vld [vmem:[%s3 + $0xa0] sm:$0xff]
  %v435 = vld [vmem:[%s3 + $0xa8] sm:$0xff]
  %v436 = vld [vmem:[%s3 + $0xb0] sm:$0xff]
  %v437 = vld [vmem:[%s3 + $0xb8] sm:$0xff]
  %v438 = vld [vmem:[%s3 + $0xc0] sm:$0xff]
  %v439 = vld [vmem:[%s3 + $0xc8] sm:$0xff]
  %v440 = vld [vmem:[%s3 + $0xd0] sm:$0xff]
  %v441 = vld [vmem:[%s3 + $0xd8] sm:$0xff]
  %v442 = vld [vmem:[%s3 + $0xe0] sm:$0xff]
  %v443 = vld [vmem:[%s3 + $0xe8] sm:$0xff]
  %v474 = vunpack.c.l.b16 %v414
  %v475 = vunpack.c.h.b16 %v414
  %v476 = vunpack.c.l.b16 %v415
  %v477 = vunpack.c.h.b16 %v415
  %v478 = vunpack.c.l.b16 %v416
  %v479 = vunpack.c.h.b16 %v416
  %v480 = vunpack.c.l.b16 %v417
  %v481 = vunpack.c.h.b16 %v417
  %v482 = vunpack.c.l.b16 %v418
  %v483 = vunpack.c.h.b16 %v418
  %v484 = vunpack.c.l.b16 %v419
  %v485 = vunpack.c.h.b16 %v419
  %v486 = vunpack.c.l.b16 %v420
  %v487 = vunpack.c.h.b16 %v420
  %v488 = vunpack.c.l.b16 %v421
  %v489 = vunpack.c.h.b16 %v421
  %v490 = vunpack.c.l.b16 %v422
  %v491 = vunpack.c.h.b16 %v422
  %v492 = vunpack.c.l.b16 %v423
  %v493 = vunpack.c.h.b16 %v423
  %v494 = vunpack.c.l.b16 %v424
  %v495 = vunpack.c.h.b16 %v424
  %v496 = vunpack.c.l.b16 %v425
  %v497 = vunpack.c.h.b16 %v425
  %v498 = vunpack.c.l.b16 %v426
  %v499 = vunpack.c.h.b16 %v426
  %v500 = vunpack.c.l.b16 %v427
  %v501 = vunpack.c.h.b16 %v427
  %v502 = vunpack.c.l.b16 %v428
  %v503 = vunpack.c.h.b16 %v428
  %v504 = vunpack.c.l.b16 %v429
  %v505 = vunpack.c.h.b16 %v429
  %v506 = vunpack.c.l.b16 %v430
  %v507 = vunpack.c.h.b16 %v430
  %v508 = vunpack.c.l.b16 %v431
  %v509 = vunpack.c.h.b16 %v431
  %v510 = vunpack.c.l.b16 %v432
  %v511 = vunpack.c.h.b16 %v432
  %v512 = vunpack.c.l.b16 %v433
  %v513 = vunpack.c.h.b16 %v433
  %v514 = vunpack.c.l.b16 %v434
  %v515 = vunpack.c.h.b16 %v434
  %v516 = vunpack.c.l.b16 %v435
  %v517 = vunpack.c.h.b16 %v435
  %v518 = vunpack.c.l.b16 %v436
  %v519 = vunpack.c.h.b16 %v436
  %v520 = vunpack.c.l.b16 %v437
  %v521 = vunpack.c.h.b16 %v437
  %v522 = vunpack.c.l.b16 %v438
  %v523 = vunpack.c.h.b16 %v438
  %v524 = vunpack.c.l.b16 %v439
  %v525 = vunpack.c.h.b16 %v439
  %v526 = vunpack.c.l.b16 %v440
  %v527 = vunpack.c.h.b16 %v440
  %v528 = vunpack.c.l.b16 %v441
  %v529 = vunpack.c.h.b16 %v441
  %v530 = vunpack.c.l.b16 %v442
  %v531 = vunpack.c.h.b16 %v442
  %v532 = vunpack.c.l.b16 %v443
  %v533 = vunpack.c.h.b16 %v443
  %v534 = vpack.c.b16 %v476, %v474
  %v535 = vpack.c.b16 %v477, %v475
  %v536 = vpack.c.b16 %v480, %v478
  %v537 = vpack.c.b16 %v481, %v479
  %v538 = vpack.c.b16 %v484, %v482
  %v539 = vpack.c.b16 %v485, %v483
  %v540 = vpack.c.b16 %v488, %v486
  %v541 = vpack.c.b16 %v489, %v487
  %v542 = vpack.c.b16 %v492, %v490
  %v543 = vpack.c.b16 %v493, %v491
  %v544 = vpack.c.b16 %v496, %v494
  %v545 = vpack.c.b16 %v497, %v495
  %v546 = vpack.c.b16 %v500, %v498
  %v547 = vpack.c.b16 %v501, %v499
  %v548 = vpack.c.b16 %v504, %v502
  %v549 = vpack.c.b16 %v505, %v503
  %v550 = vpack.c.b16 %v508, %v506
  %v551 = vpack.c.b16 %v509, %v507
  %v552 = vpack.c.b16 %v512, %v510
  %v553 = vpack.c.b16 %v513, %v511
  %v554 = vpack.c.b16 %v516, %v514
  %v555 = vpack.c.b16 %v517, %v515
  %v556 = vpack.c.b16 %v520, %v518
  %v557 = vpack.c.b16 %v521, %v519
  %v558 = vpack.c.b16 %v524, %v522
  %v559 = vpack.c.b16 %v525, %v523
  %v560 = vpack.c.b16 %v528, %v526
  %v561 = vpack.c.b16 %v529, %v527
  %v562 = vpack.c.b16 %v532, %v530
  %v563 = vpack.c.b16 %v533, %v531
  %vm594 = vcmask 916480
  %v596 = vsel %vm594, %v413, 0
  %598 = vmatprep.subr.bf16.mxu0 %v535
  %599 = vmatpush1.bf16.msra.mxu0 %v534
  %600 = vmatprep.subr.bf16.mxu0 %v537
  %601 = vmatpush1.bf16.msra.mxu0 %v536
  %602 = vmatprep.subr.bf16.mxu0 %v539
  %603 = vmatpush1.bf16.msra.mxu0 %v538
  %604 = vmatprep.subr.bf16.mxu0 %v541
  %605 = vmatpush1.bf16.msra.mxu0 %v540
  %606 = vmatprep.subr.bf16.mxu0 %v543
  %607 = vmatpush1.bf16.msra.mxu0 %v542
  %608 = vmatprep.subr.bf16.mxu0 %v545
  %609 = vmatpush1.bf16.msra.mxu0 %v544
  %610 = vmatprep.subr.bf16.mxu0 %v547
  %611 = vmatpush1.bf16.msra.mxu0 %v546
  %612 = vmatprep.subr.bf16.mxu0 %v549
  %613 = vmatpush1.bf16.msra.mxu0 %v548
  %614 = vmatprep.subr.bf16.mxu0 %v551
  %615 = vmatpush1.bf16.msra.mxu0 %v550
  %616 = vmatprep.subr.bf16.mxu0 %v553
  %617 = vmatpush1.bf16.msra.mxu0 %v552
  %618 = vmatprep.subr.bf16.mxu0 %v555
  %619 = vmatpush1.bf16.msra.mxu0 %v554
  %620 = vmatprep.subr.bf16.mxu0 %v557
  %621 = vmatpush1.bf16.msra.mxu0 %v556
  %622 = vmatprep.subr.bf16.mxu0 %v559
  %623 = vmatpush1.bf16.msra.mxu0 %v558
  %624 = vmatprep.subr.bf16.mxu0 %v561
  %625 = vmatpush1.bf16.msra.mxu0 %v560
  %626 = vmatprep.subr.bf16.mxu0 %v563
  %627 = vmatpush1.bf16.msra.mxu0 %v562
  %628 = vmatprep.subr.bf16.mxu0 0
  %629 = vmatpush1.bf16.msra.mxu0 0
  %630 = vmatprep.mubr.bf16.mxu0 %v596
  %631 = vmatmul.mubr.bf16.gmra.mrb[0].mxu0 %v412
  %v632 = vpop.f32.mrb[0].mxu0
  %v633 = vadd.f32 0.0, %v632
  %v634 = vpop.f32.mrb[0].mxu0
  %v635 = vadd.f32 0.0, %v634
  %v636 = vpop.f32.mrb[0].mxu0
  %v637 = vpop.f32.mrb[0].mxu0
  %638 = vdwg.mxu0
  %s639 = scalar_lea.vmem %s3, 240
  %v640 = vld [vmem:[%s639] sm:$0xff]
  %v641 = vld [vmem:[%s639 + $0x8] sm:$0xff]
  %v642 = vld [vmem:[%s639 + $0x10] sm:$0xff]
  %v643 = vld [vmem:[%s639 + $0x18] sm:$0xff]
  %v644 = vld [vmem:[%s639 + $0x20] sm:$0xff]
  %v645 = vld [vmem:[%s639 + $0x28] sm:$0xff]
  %v646 = vld [vmem:[%s639 + $0x30] sm:$0xff]
  %v647 = vld [vmem:[%s639 + $0x38] sm:$0xff]
  %v648 = vld [vmem:[%s639 + $0x40] sm:$0xff]
  %v649 = vld [vmem:[%s639 + $0x48] sm:$0xff]
  %v650 = vld [vmem:[%s639 + $0x50] sm:$0xff]
  %v651 = vld [vmem:[%s639 + $0x58] sm:$0xff]
  %v652 = vld [vmem:[%s639 + $0x60] sm:$0xff]
  %v653 = vld [vmem:[%s639 + $0x68] sm:$0xff]
  %v654 = vld [vmem:[%s639 + $0x70] sm:$0xff]
  %v655 = vld [vmem:[%s639 + $0x78] sm:$0xff]
  %v656 = vld [vmem:[%s639 + $0x80] sm:$0xff]
  %v657 = vld [vmem:[%s639 + $0x88] sm:$0xff]
  %v658 = vld [vmem:[%s639 + $0x90] sm:$0xff]
  %v659 = vld [vmem:[%s639 + $0x98] sm:$0xff]
  %v660 = vld [vmem:[%s639 + $0xa0] sm:$0xff]
  %v661 = vld [vmem:[%s639 + $0xa8] sm:$0xff]
  %v662 = vld [vmem:[%s639 + $0xb0] sm:$0xff]
  %v663 = vld [vmem:[%s639 + $0xb8] sm:$0xff]
  %v664 = vld [vmem:[%s639 + $0xc0] sm:$0xff]
  %v665 = vld [vmem:[%s639 + $0xc8] sm:$0xff]
  %v666 = vld [vmem:[%s639 + $0xd0] sm:$0xff]
  %v667 = vld [vmem:[%s639 + $0xd8] sm:$0xff]
  %v668 = vld [vmem:[%s639 + $0xe0] sm:$0xff]
  %v669 = vld [vmem:[%s639 + $0xe8] sm:$0xff]
  %v700 = vunpack.c.l.b16 %v640
  %v701 = vunpack.c.h.b16 %v640
  %v702 = vunpack.c.l.b16 %v641
  %v703 = vunpack.c.h.b16 %v641
  %v704 = vunpack.c.l.b16 %v642
  %v705 = vunpack.c.h.b16 %v642
  %v706 = vunpack.c.l.b16 %v643
  %v707 = vunpack.c.h.b16 %v643
  %v708 = vunpack.c.l.b16 %v644
  %v709 = vunpack.c.h.b16 %v644
  %v710 = vunpack.c.l.b16 %v645
  %v711 = vunpack.c.h.b16 %v645
  %v712 = vunpack.c.l.b16 %v646
  %v713 = vunpack.c.h.b16 %v646
  %v714 = vunpack.c.l.b16 %v647
  %v715 = vunpack.c.h.b16 %v647
  %v716 = vunpack.c.l.b16 %v648
  %v717 = vunpack.c.h.b16 %v648
  %v718 = vunpack.c.l.b16 %v649
  %v719 = vunpack.c.h.b16 %v649
  %v720 = vunpack.c.l.b16 %v650
  %v721 = vunpack.c.h.b16 %v650
  %v722 = vunpack.c.l.b16 %v651
  %v723 = vunpack.c.h.b16 %v651
  %v724 = vunpack.c.l.b16 %v652
  %v725 = vunpack.c.h.b16 %v652
  %v726 = vunpack.c.l.b16 %v653
  %v727 = vunpack.c.h.b16 %v653
  %v728 = vunpack.c.l.b16 %v654
  %v729 = vunpack.c.h.b16 %v654
  %v730 = vunpack.c.l.b16 %v655
  %v731 = vunpack.c.h.b16 %v655
  %v732 = vunpack.c.l.b16 %v656
  %v733 = vunpack.c.h.b16 %v656
  %v734 = vunpack.c.l.b16 %v657
  %v735 = vunpack.c.h.b16 %v657
  %v736 = vunpack.c.l.b16 %v658
  %v737 = vunpack.c.h.b16 %v658
  %v738 = vunpack.c.l.b16 %v659
  %v739 = vunpack.c.h.b16 %v659
  %v740 = vunpack.c.l.b16 %v660
  %v741 = vunpack.c.h.b16 %v660
  %v742 = vunpack.c.l.b16 %v661
  %v743 = vunpack.c.h.b16 %v661
  %v744 = vunpack.c.l.b16 %v662
  %v745 = vunpack.c.h.b16 %v662
  %v746 = vunpack.c.l.b16 %v663
  %v747 = vunpack.c.h.b16 %v663
  %v748 = vunpack.c.l.b16 %v664
  %v749 = vunpack.c.h.b16 %v664
  %v750 = vunpack.c.l.b16 %v665
  %v751 = vunpack.c.h.b16 %v665
  %v752 = vunpack.c.l.b16 %v666
  %v753 = vunpack.c.h.b16 %v666
  %v754 = vunpack.c.l.b16 %v667
  %v755 = vunpack.c.h.b16 %v667
  %v756 = vunpack.c.l.b16 %v668
  %v757 = vunpack.c.h.b16 %v668
  %v758 = vunpack.c.l.b16 %v669
  %v759 = vunpack.c.h.b16 %v669
  %v760 = vpack.c.b16 %v702, %v700
  %v761 = vpack.c.b16 %v703, %v701
  %v762 = vpack.c.b16 %v706, %v704
  %v763 = vpack.c.b16 %v707, %v705
  %v764 = vpack.c.b16 %v710, %v708
  %v765 = vpack.c.b16 %v711, %v709
  %v766 = vpack.c.b16 %v714, %v712
  %v767 = vpack.c.b16 %v715, %v713
  %v768 = vpack.c.b16 %v718, %v716
  %v769 = vpack.c.b16 %v719, %v717
  %v770 = vpack.c.b16 %v722, %v720
  %v771 = vpack.c.b16 %v723, %v721
  %v772 = vpack.c.b16 %v726, %v724
  %v773 = vpack.c.b16 %v727, %v725
  %v774 = vpack.c.b16 %v730, %v728
  %v775 = vpack.c.b16 %v731, %v729
  %v776 = vpack.c.b16 %v734, %v732
  %v777 = vpack.c.b16 %v735, %v733
  %v778 = vpack.c.b16 %v738, %v736
  %v779 = vpack.c.b16 %v739, %v737
  %v780 = vpack.c.b16 %v742, %v740
  %v781 = vpack.c.b16 %v743, %v741
  %v782 = vpack.c.b16 %v746, %v744
  %v783 = vpack.c.b16 %v747, %v745
  %v784 = vpack.c.b16 %v750, %v748
  %v785 = vpack.c.b16 %v751, %v749
  %v786 = vpack.c.b16 %v754, %v752
  %v787 = vpack.c.b16 %v755, %v753
  %v788 = vpack.c.b16 %v758, %v756
  %v789 = vpack.c.b16 %v759, %v757
  %820 = vmatprep.subr.bf16.mxu0 %v761
  %821 = vmatpush1.bf16.msra.mxu0 %v760
  %822 = vmatprep.subr.bf16.mxu0 %v763
  %823 = vmatpush1.bf16.msra.mxu0 %v762
  %824 = vmatprep.subr.bf16.mxu0 %v765
  %825 = vmatpush1.bf16.msra.mxu0 %v764
  %826 = vmatprep.subr.bf16.mxu0 %v767
  %827 = vmatpush1.bf16.msra.mxu0 %v766
  %828 = vmatprep.subr.bf16.mxu0 %v769
  %829 = vmatpush1.bf16.msra.mxu0 %v768
  %830 = vmatprep.subr.bf16.mxu0 %v771
  %831 = vmatpush1.bf16.msra.mxu0 %v770
  %832 = vmatprep.subr.bf16.mxu0 %v773
  %833 = vmatpush1.bf16.msra.mxu0 %v772
  %834 = vmatprep.subr.bf16.mxu0 %v775
  %835 = vmatpush1.bf16.msra.mxu0 %v774
  %836 = vmatprep.subr.bf16.mxu0 %v777
  %837 = vmatpush1.bf16.msra.mxu0 %v776
  %838 = vmatprep.subr.bf16.mxu0 %v779
  %839 = vmatpush1.bf16.msra.mxu0 %v778
  %840 = vmatprep.subr.bf16.mxu0 %v781
  %841 = vmatpush1.bf16.msra.mxu0 %v780
  %842 = vmatprep.subr.bf16.mxu0 %v783
  %843 = vmatpush1.bf16.msra.mxu0 %v782
  %844 = vmatprep.subr.bf16.mxu0 %v785
  %845 = vmatpush1.bf16.msra.mxu0 %v784
  %846 = vmatprep.subr.bf16.mxu0 %v787
  %847 = vmatpush1.bf16.msra.mxu0 %v786
  %848 = vmatprep.subr.bf16.mxu0 %v789
  %849 = vmatpush1.bf16.msra.mxu0 %v788
  %850 = vmatprep.subr.bf16.mxu0 0
  %851 = vmatpush1.bf16.msra.mxu0 0
  %852 = vmatprep.mubr.bf16.mxu0 %v596
  %853 = vmatmul.mubr.bf16.gmra.mrb[0].mxu0 %v412
  %v854 = vpop.f32.mrb[0].mxu0
  %v855 = vadd.f32 0.0, %v854
  %v856 = vpop.f32.mrb[0].mxu0
  %v857 = vadd.f32 0.0, %v856
  %v858 = vpop.f32.mrb[0].mxu0
  %v859 = vpop.f32.mrb[0].mxu0
  %860 = vdwg.mxu0
  %s861 = scalar_lea.vmem %s3, 480
  %v862 = vld [vmem:[%s861] sm:$0xff]
  %v863 = vld [vmem:[%s861 + $0x8] sm:$0xff]
  %v864 = vld [vmem:[%s861 + $0x10] sm:$0xff]
  %v865 = vld [vmem:[%s861 + $0x18] sm:$0xff]
  %v866 = vld [vmem:[%s861 + $0x20] sm:$0xff]
  %v867 = vld [vmem:[%s861 + $0x28] sm:$0xff]
  %v868 = vld [vmem:[%s861 + $0x30] sm:$0xff]
  %v869 = vld [vmem:[%s861 + $0x38] sm:$0xff]
  %v870 = vld [vmem:[%s861 + $0x40] sm:$0xff]
  %v871 = vld [vmem:[%s861 + $0x48] sm:$0xff]
  %v872 = vld [vmem:[%s861 + $0x50] sm:$0xff]
  %v873 = vld [vmem:[%s861 + $0x58] sm:$0xff]
  %v874 = vld [vmem:[%s861 + $0x60] sm:$0xff]
  %v875 = vld [vmem:[%s861 + $0x68] sm:$0xff]
  %v876 = vld [vmem:[%s861 + $0x70] sm:$0xff]
  %v877 = vld [vmem:[%s861 + $0x78] sm:$0xff]
  %v878 = vld [vmem:[%s861 + $0x80] sm:$0xff]
  %v879 = vld [vmem:[%s861 + $0x88] sm:$0xff]
  %v880 = vld [vmem:[%s861 + $0x90] sm:$0xff]
  %v881 = vld [vmem:[%s861 + $0x98] sm:$0xff]
  %v882 = vld [vmem:[%s861 + $0xa0] sm:$0xff]
  %v883 = vld [vmem:[%s861 + $0xa8] sm:$0xff]
  %v884 = vld [vmem:[%s861 + $0xb0] sm:$0xff]
  %v885 = vld [vmem:[%s861 + $0xb8] sm:$0xff]
  %v886 = vld [vmem:[%s861 + $0xc0] sm:$0xff]
  %v887 = vld [vmem:[%s861 + $0xc8] sm:$0xff]
  %v888 = vld [vmem:[%s861 + $0xd0] sm:$0xff]
  %v889 = vld [vmem:[%s861 + $0xd8] sm:$0xff]
  %v890 = vld [vmem:[%s861 + $0xe0] sm:$0xff]
  %v891 = vld [vmem:[%s861 + $0xe8] sm:$0xff]
  %v922 = vunpack.c.l.b16 %v862
  %v923 = vunpack.c.h.b16 %v862
  %v924 = vunpack.c.l.b16 %v863
  %v925 = vunpack.c.h.b16 %v863
  %v926 = vunpack.c.l.b16 %v864
  %v927 = vunpack.c.h.b16 %v864
  %v928 = vunpack.c.l.b16 %v865
  %v929 = vunpack.c.h.b16 %v865
  %v930 = vunpack.c.l.b16 %v866
  %v931 = vunpack.c.h.b16 %v866
  %v932 = vunpack.c.l.b16 %v867
  %v933 = vunpack.c.h.b16 %v867
  %v934 = vunpack.c.l.b16 %v868
  %v935 = vunpack.c.h.b16 %v868
  %v936 = vunpack.c.l.b16 %v869
  %v937 = vunpack.c.h.b16 %v869
  %v938 = vunpack.c.l.b16 %v870
  %v939 = vunpack.c.h.b16 %v870
  %v940 = vunpack.c.l.b16 %v871
  %v941 = vunpack.c.h.b16 %v871
  %v942 = vunpack.c.l.b16 %v872
  %v943 = vunpack.c.h.b16 %v872
  %v944 = vunpack.c.l.b16 %v873
  %v945 = vunpack.c.h.b16 %v873
  %v946 = vunpack.c.l.b16 %v874
  %v947 = vunpack.c.h.b16 %v874
  %v948 = vunpack.c.l.b16 %v875
  %v949 = vunpack.c.h.b16 %v875
  %v950 = vunpack.c.l.b16 %v876
  %v951 = vunpack.c.h.b16 %v876
  %v952 = vunpack.c.l.b16 %v877
  %v953 = vunpack.c.h.b16 %v877
  %v954 = vunpack.c.l.b16 %v878
  %v955 = vunpack.c.h.b16 %v878
  %v956 = vunpack.c.l.b16 %v879
  %v957 = vunpack.c.h.b16 %v879
  %v958 = vunpack.c.l.b16 %v880
  %v959 = vunpack.c.h.b16 %v880
  %v960 = vunpack.c.l.b16 %v881
  %v961 = vunpack.c.h.b16 %v881
  %v962 = vunpack.c.l.b16 %v882
  %v963 = vunpack.c.h.b16 %v882
  %v964 = vunpack.c.l.b16 %v883
  %v965 = vunpack.c.h.b16 %v883
  %v966 = vunpack.c.l.b16 %v884
  %v967 = vunpack.c.h.b16 %v884
  %v968 = vunpack.c.l.b16 %v885
  %v969 = vunpack.c.h.b16 %v885
  %v970 = vunpack.c.l.b16 %v886
  %v971 = vunpack.c.h.b16 %v886
  %v972 = vunpack.c.l.b16 %v887
  %v973 = vunpack.c.h.b16 %v887
  %v974 = vunpack.c.l.b16 %v888
  %v975 = vunpack.c.h.b16 %v888
  %v976 = vunpack.c.l.b16 %v889
  %v977 = vunpack.c.h.b16 %v889
  %v978 = vunpack.c.l.b16 %v890
  %v979 = vunpack.c.h.b16 %v890
  %v980 = vunpack.c.l.b16 %v891
  %v981 = vunpack.c.h.b16 %v891
  %v982 = vpack.c.b16 %v924, %v922
  %v983 = vpack.c.b16 %v925, %v923
  %v984 = vpack.c.b16 %v928, %v926
  %v985 = vpack.c.b16 %v929, %v927
  %v986 = vpack.c.b16 %v932, %v930
  %v987 = vpack.c.b16 %v933, %v931
  %v988 = vpack.c.b16 %v936, %v934
  %v989 = vpack.c.b16 %v937, %v935
  %v990 = vpack.c.b16 %v940, %v938
  %v991 = vpack.c.b16 %v941, %v939
  %v992 = vpack.c.b16 %v944, %v942
  %v993 = vpack.c.b16 %v945, %v943
  %v994 = vpack.c.b16 %v948, %v946
  %v995 = vpack.c.b16 %v949, %v947
  %v996 = vpack.c.b16 %v952, %v950
  %v997 = vpack.c.b16 %v953, %v951
  %v998 = vpack.c.b16 %v956, %v954
  %v999 = vpack.c.b16 %v957, %v955
  %v1000 = vpack.c.b16 %v960, %v958
  %v1001 = vpack.c.b16 %v961, %v959
  %v1002 = vpack.c.b16 %v964, %v962
  %v1003 = vpack.c.b16 %v965, %v963
  %v1004 = vpack.c.b16 %v968, %v966
  %v1005 = vpack.c.b16 %v969, %v967
  %v1006 = vpack.c.b16 %v972, %v970
  %v1007 = vpack.c.b16 %v973, %v971
  %v1008 = vpack.c.b16 %v976, %v974
  %v1009 = vpack.c.b16 %v977, %v975
  %v1010 = vpack.c.b16 %v980, %v978
  %v1011 = vpack.c.b16 %v981, %v979
  %1042 = vmatprep.subr.bf16.mxu0 %v983
  %1043 = vmatpush1.bf16.msra.mxu0 %v982
  %1044 = vmatprep.subr.bf16.mxu0 %v985
  %1045 = vmatpush1.bf16.msra.mxu0 %v984
  %1046 = vmatprep.subr.bf16.mxu0 %v987
  %1047 = vmatpush1.bf16.msra.mxu0 %v986
  %1048 = vmatprep.subr.bf16.mxu0 %v989
  %1049 = vmatpush1.bf16.msra.mxu0 %v988
  %1050 = vmatprep.subr.bf16.mxu0 %v991
  %1051 = vmatpush1.bf16.msra.mxu0 %v990
  %1052 = vmatprep.subr.bf16.mxu0 %v993
  %1053 = vmatpush1.bf16.msra.mxu0 %v992
  %1054 = vmatprep.subr.bf16.mxu0 %v995
  %1055 = vmatpush1.bf16.msra.mxu0 %v994
  %1056 = vmatprep.subr.bf16.mxu0 %v997
  %1057 = vmatpush1.bf16.msra.mxu0 %v996
  %1058 = vmatprep.subr.bf16.mxu0 %v999
  %1059 = vmatpush1.bf16.msra.mxu0 %v998
  %1060 = vmatprep.subr.bf16.mxu0 %v1001
  %1061 = vmatpush1.bf16.msra.mxu0 %v1000
  %1062 = vmatprep.subr.bf16.mxu0 %v1003
  %1063 = vmatpush1.bf16.msra.mxu0 %v1002
  %1064 = vmatprep.subr.bf16.mxu0 %v1005
  %1065 = vmatpush1.bf16.msra.mxu0 %v1004
  %1066 = vmatprep.subr.bf16.mxu0 %v1007
  %1067 = vmatpush1.bf16.msra.mxu0 %v1006
  %1068 = vmatprep.subr.bf16.mxu0 %v1009
  %1069 = vmatpush1.bf16.msra.mxu0 %v1008
  %1070 = vmatprep.subr.bf16.mxu0 %v1011
  %1071 = vmatpush1.bf16.msra.mxu0 %v1010
  %1072 = vmatprep.subr.bf16.mxu0 0
  %1073 = vmatpush1.bf16.msra.mxu0 0
  %1074 = vmatprep.mubr.bf16.mxu0 %v596
  %1075 = vmatmul.mubr.bf16.gmra.mrb[0].mxu0 %v412
  %v1076 = vpop.f32.mrb[0].mxu0
  %v1077 = vadd.f32 0.0, %v1076
  %v1078 = vpop.f32.mrb[0].mxu0
  %v1079 = vadd.f32 0.0, %v1078
  %v1080 = vpop.f32.mrb[0].mxu0
  %v1081 = vpop.f32.mrb[0].mxu0
  %1082 = vdwg.mxu0
  %v1083 = vld [vmem:[%s4] sm:$0x3]
  %v1085 = vlaneseq
  %v1086 = vshrl.u32 %v1085, 7
  %v1087 = vsub.s32 0, %v1086
  %v1088 = vrot.slane %v1083, %v1087
  %v1089 = vlaneseq
  %v1090 = vshrl.u32 %v1089, 7
  %v1091 = vsub.s32 1, %v1090
  %v1092 = vrot.slane %v1083, %v1091
  %v1095 = vadd.f32 %v1088, %v633
  %v1096 = vadd.f32 %v1092, %v635
  %v1097 = vadd.f32 %v1088, 0.0
  %v1098 = vadd.f32 %v1092, 0.0
  %v1101 = vrot.slane %v855, 7
  %v1102 = vrot.slane %v857, 7
  %vm1105 = vcmask 1040384
  %v1106 = vsel %vm1105, 0.0, %v1101
  %v1107 = vsel %vm1105, 0.0, %v1102
  %v1108 = vsel %vm1105, %v1101, 0.0
  %v1109 = vsel %vm1105, %v1102, 0.0
  %v1110 = vadd.f32 %v1095, %v1106
  %v1111 = vadd.f32 %v1096, %v1107
  %v1112 = vadd.f32 %v1097, %v1108
  %v1113 = vadd.f32 %v1098, %v1109
  %v1116 = vrot.slane %v1077, 6
  %v1117 = vrot.slane %v1079, 6
  %vm1120 = vcmask 1041408
  %v1121 = vsel %vm1120, 0.0, %v1116
  %v1122 = vsel %vm1120, 0.0, %v1117
  %v1123 = vadd.f32 %v1110, %v1121
  %v1124 = vadd.f32 %v1111, %v1122
  %v1125 = vadd.f32 %v1112, %v1116
  %v1126 = vadd.f32 %v1113, %v1117
  %v1127 = vadd.f32 %v1123, 3.0
  %v1128 = vadd.f32 %v1124, 3.0
  %v1129 = vadd.f32 %v1125, 3.0
  %v1130 = vadd.f32 %v1126, 3.0
  %v1131 = vmax.f32 %v1127, 0.0
  %v1132 = vmax.f32 %v1128, 0.0
  %v1133 = vmax.f32 %v1129, 0.0
  %v1134 = vmax.f32 %v1130, 0.0
  %v1135 = vmin.f32 %v1131, 6.0
  %v1136 = vmin.f32 %v1132, 6.0
  %v1137 = vmin.f32 %v1133, 6.0
  %v1138 = vmin.f32 %v1134, 6.0
  %v1139 = vmul.f32 %v1123, %v1135
  %v1140 = vmul.f32 %v1124, %v1136
  %v1141 = vmul.f32 %v1125, %v1137
  %v1142 = vmul.f32 %v1126, %v1138
  %v1143 = vmul.f32 %v1139, 0.16666667
  %v1144 = vmul.f32 %v1140, 0.16666667
  %v1145 = vmul.f32 %v1141, 0.16666667
  %v1146 = vmul.f32 %v1142, 0.16666667
  %1147 = vst [vmem:[%s5] sm:$0xff] %v1143
  %vm1148 = vcmask 523264
  %1149 = vst.msk [vmem:[%s5 + $0x8] sm:$0xff] %vm1148, %v1144
  %1150 = vst [vmem:[%s5 + $0x10] sm:$0x3] %v1145
  %vm1151 = vcmask 517120
  %1152 = vst.msk [vmem:[%s5 + $0x18] sm:$0x3] %vm1151, %v1146
  // Predicated region
  $region22: #{model_forward.1} parent=0 // pred_check
    _
  $region23: #{model_forward.1} parent=0 // pred_check_branch
    %1154 = sbr.rel (0) target = $region25
  $region24: #{model_forward.1} parent=0 // pred_region
    _
  $region25: #{model_forward.1} parent=0 // pred_fallthru
    _
  // Predicated region
  $region26: #{model_forward.1} parent=0 // pred_check
    _
  $region27: #{model_forward.1} parent=0 // pred_check_branch
    %1156 = sbr.rel (0) target = $region29
  $region28: #{model_forward.1} parent=0 // pred_region
    _
  $region29: #{model_forward.1} parent=0 // pred_fallthru
    _

</llo_original>
